<compile_context>
chip_gen: v7x
topology: tpu7x:2x2x1
jax: 0.10.0
libtpu: 0.0.40
codegen_flags: <defaults>
</compile_context>

<pallas_src>
import jax
import jax.numpy as jnp
from jax.experimental import pallas as pl
from jax.experimental.pallas import tpu as pltpu

_EPS = 1e-8              # torch cosine_similarity eps
_EPS_SQ = _EPS * _EPS    # clamp applied to w1*w2 (product of squared norms)


def _round_up(x, m):
    return ((x + m - 1) // m) * m


def _vmem_budgets():
    """(pipeline VMEM budget, vmem_limit_bytes), generation aware."""
    vmem_cap = None
    try:
        info = pltpu.get_tpu_info()
        vmem_cap = int(getattr(info, "vmem_capacity_bytes", 0)) or None
    except Exception:
        vmem_cap = None
    if vmem_cap is None:
        vmem_cap = 64 * 1024 * 1024                      # conservative: assume v7x-class
    if vmem_cap <= 64 * 1024 * 1024:                     # v7x: 64 MiB per TensorCore
        return 24 * 1024 * 1024, 44 * 1024 * 1024
    return 56 * 1024 * 1024, 96 * 1024 * 1024            # v5e/v6e: 128 MiB per TC


def _pick_tile_rows(batch, dim, dtype, pipeline_budget_bytes):
    """Largest sublane-aligned batch tile that fits the VMEM pipeline budget."""
    itemsize = jnp.dtype(dtype).itemsize
    sublane = {1: 32, 2: 16, 4: 8}.get(itemsize, 8)      # dtype-native sublane packing
    lanes = _round_up(dim, 128)                          # VMEM rows are lane-padded

    # Per tile-row VMEM bytes:
    #   pipeline:    4 inputs x 2 double-buffers x lane-padded native row
    #   temporaries: f32 upcasts / unfused p*z, p*p, z*z products (~2x headroom)
    row_pipeline = 4 * 2 * lanes * itemsize
    row_temps = 8 * lanes * 4
    tb = pipeline_budget_bytes // max(row_pipeline + row_temps, 1)
    tb = max(sublane, (tb // sublane) * sublane)

    batch_al = _round_up(batch, sublane)
    if tb >= batch_al:
        # Whole batch fits in one tile: split into (at least) two sublane-aligned
        # tiles when possible so "parallel" can shard across both v7x TensorCores.
        tb = max(sublane, _round_up(batch_al // 2, sublane))
    return min(tb, batch_al)


def _make_kernel(tb, batch):
    def kernel(p1_ref, z2_ref, p2_ref, z1_ref, out_ref):
        # In-kernel remainder masking (replaces wrapper-side jnp.pad): rows at or
        # beyond `batch` in the last tile hold undefined data and are selected to 0.
        row0 = pl.program_id(0) * tb
        row_ids = row0 + jax.lax.broadcasted_iota(jnp.int32, (tb, 1), 0)
        valid = row_ids < batch

        def cos_rows(p_ref, z_ref):
            p = p_ref[...].astype(jnp.float32)
            z = z_ref[...].astype(jnp.float32)
            w12 = jnp.sum(p * z, axis=-1, keepdims=True)       # [TB, 1]
            w1 = jnp.sum(p * p, axis=-1, keepdims=True)        # [TB, 1]
            w2 = jnp.sum(z * z, axis=-1, keepdims=True)        # [TB, 1]
            # torch cosine_similarity: w12 / sqrt(max(w1*w2, eps^2)); rsqrt -> EUP.
            cos = w12 * jax.lax.rsqrt(jnp.maximum(w1 * w2, _EPS_SQ))
            # select (not multiply) so NaN/Inf garbage in masked rows cannot leak.
            return jnp.where(valid, cos, 0.0)

        partial = jnp.sum(cos_rows(p1_ref, z2_ref) + cos_rows(p2_ref, z1_ref))
        # Lane-dense (1, 8, 128) output block: broadcast scalar -> unmasked store.
        out_ref[...] = jnp.full(out_ref.shape, partial, dtype=out_ref.dtype)

    return kernel


def simsiam_loss(z1, z2, p1, p2, *, tile_rows=None):
    """Pallas implementation of SimSiamLoss(version='simplified').forward.

    loss = 0.5 * (-mean cos(p1, z2)) + 0.5 * (-mean cos(p2, z1))
    """
    assert z1.shape == z2.shape == p1.shape == p2.shape
    assert z1.ndim == 2, "expected [batch, dim] inputs"
    batch, dim = z1.shape

    pipeline_budget, vmem_limit = _vmem_budgets()
    tb = (tile_rows if tile_rows is not None
          else _pick_tile_rows(batch, dim, p1.dtype, pipeline_budget))
    assert tb % 8 == 0, "tile_rows must be a multiple of 8"
    num_tiles = pl.cdiv(batch, tb)

    in_spec = pl.BlockSpec((tb, dim), lambda i: (i, 0))
    partials = pl.pallas_call(
        _make_kernel(tb, batch),
        out_shape=jax.ShapeDtypeStruct((num_tiles, 8, 128), jnp.float32),
        grid=(num_tiles,),
        in_specs=[in_spec, in_spec, in_spec, in_spec],
        out_specs=pl.BlockSpec((1, 8, 128), lambda i: (i, 0, 0)),
        compiler_params=pltpu.CompilerParams(
            dimension_semantics=("parallel",),   # independent tiles (2 TCs on v7x)
            vmem_limit_bytes=vmem_limit,
        ),
    )(p1, z2, p2, z1)

    total_cos = jnp.sum(partials[:, 0, 0])
    return -0.5 * total_cos / batch


def _reference(z1, z2, p1, p2):
    """Pure-JAX reference matching torch.nn.functional.cosine_similarity."""
    def neg_mean_cos(p, z):
        p = p.astype(jnp.float32)
        z = z.astype(jnp.float32)
        w12 = jnp.sum(p * z, axis=-1)
        w1 = jnp.sum(p * p, axis=-1)
        w2 = jnp.sum(z * z, axis=-1)
        cos = w12 / jnp.sqrt(jnp.maximum(w1 * w2, _EPS_SQ))
        return -jnp.mean(cos)
    return 0.5 * neg_mean_cos(p1, z2) + 0.5 * neg_mean_cos(p2, z1)


if __name__ == "__main__":
    key = jax.random.PRNGKey(0)

    # Case 1: small shape consistent with the module (single tile, lane-padded D).
    B, D = 8, 32
    k1, k2, k3, k4, key = jax.random.split(key, 5)
    z1 = jax.random.normal(k1, (B, D), dtype=jnp.float32)
    z2 = jax.random.normal(k2, (B, D), dtype=jnp.float32)
    p1 = jax.random.normal(k3, (B, D), dtype=jnp.float32)
    p2 = jax.random.normal(k4, (B, D), dtype=jnp.float32)
    loss = jax.block_until_ready(simsiam_loss(z1, z2, p1, p2))
    ref = jax.block_until_ready(_reference(z1, z2, p1, p2))
    assert jnp.allclose(loss, ref, atol=1e-5, rtol=1e-5), (loss, ref)

    # Case 2: non-multiple-of-8 batch with default tiling -> 2 tiles, in-kernel
    # remainder masking (no wrapper-side padding / HBM copies).
    B2, D2 = 20, 384
    k1, k2, k3, k4, key = jax.random.split(key, 5)
    z1b = jax.random.normal(k1, (B2, D2), dtype=jnp.float32)
    z2b = jax.random.normal(k2, (B2, D2), dtype=jnp.float32)
    p1b = jax.random.normal(k3, (B2, D2), dtype=jnp.float32)
    p2b = jax.random.normal(k4, (B2, D2), dtype=jnp.float32)
    loss2 = jax.block_until_ready(simsiam_loss(z1b, z2b, p1b, p2b))
    ref2 = jax.block_until_ready(_reference(z1b, z2b, p1b, p2b))
    assert jnp.allclose(loss2, ref2, atol=1e-5, rtol=1e-5), (loss2, ref2)

    # Case 3: forced tiny tile -> 3-step grid, masking only in the last tile,
    # exercises the parallel partial reduction across multiple tiles.
    loss3 = jax.block_until_ready(simsiam_loss(z1b, z2b, p1b, p2b, tile_rows=8))
    assert jnp.allclose(loss3, ref2, atol=1e-5, rtol=1e-5), (loss3, ref2)

    print("KERNEL_OK")
</pallas_src>

<mosaic_0001>
module attributes {stable_mosaic.version = 11 : i64} {
  func.func @kernel(%arg0: i32, %arg1: memref<8x32xf32, #tpu.memory_space<vmem>>, %arg2: memref<8x32xf32, #tpu.memory_space<vmem>>, %arg3: memref<8x32xf32, #tpu.memory_space<vmem>>, %arg4: memref<8x32xf32, #tpu.memory_space<vmem>>, %arg5: memref<1x8x128xf32, #tpu.memory_space<vmem>>) attributes {dimension_semantics = [#tpu.dimension_semantics<parallel>], iteration_bounds = array<i64: 1>, scalar_prefetch = 0 : i64, scratch_operands = 0 : i64, tpu.core_type = #tpu.core_type<tc>, window_params = [{transform_indices = @transform_0, window_bounds = array<i64: 8, 32>}, {transform_indices = @transform_1, window_bounds = array<i64: 8, 32>}, {transform_indices = @transform_2, window_bounds = array<i64: 8, 32>}, {transform_indices = @transform_3, window_bounds = array<i64: 8, 32>}, {transform_indices = @transform_4, window_bounds = array<i64: 1, 8, 128>}]} {
    %c8_i32 = arith.constant 8 : i32
    %0 = arith.muli %arg0, %c8_i32 : i32
    %1 = tpu.iota {dimensions = array<i32: 0>} : vector<8x1xi32>
    %2 = vector.broadcast %0 : i32 to vector<8x1xi32>
    %3 = arith.addi %2, %1 : vector<8x1xi32>
    %c8_i32_0 = arith.constant 8 : i32
    %4 = vector.broadcast %c8_i32_0 : i32 to vector<8x1xi32>
    %5 = arith.cmpi slt, %3, %4 : vector<8x1xi32>
    %c0 = arith.constant 0 : index
    %c0_1 = arith.constant 0 : index
    %6 = vector.load %arg1[%c0, %c0_1] : memref<8x32xf32, #tpu.memory_space<vmem>>, vector<8x32xf32>
    %c0_2 = arith.constant 0 : index
    %c0_3 = arith.constant 0 : index
    %7 = vector.load %arg2[%c0_2, %c0_3] : memref<8x32xf32, #tpu.memory_space<vmem>>, vector<8x32xf32>
    %8 = arith.mulf %6, %7 : vector<8x32xf32>
    %cst = arith.constant dense<0.000000e+00> : vector<8xf32>
    %9 = vector.multi_reduction <add>, %8, %cst [1] : vector<8x32xf32> to vector<8xf32>
    %10 = vector.shape_cast %9 : vector<8xf32> to vector<8x1xf32>
    %11 = arith.mulf %6, %6 : vector<8x32xf32>
    %cst_4 = arith.constant dense<0.000000e+00> : vector<8xf32>
    %12 = vector.multi_reduction <add>, %11, %cst_4 [1] : vector<8x32xf32> to vector<8xf32>
    %13 = vector.shape_cast %12 : vector<8xf32> to vector<8x1xf32>
    %14 = arith.mulf %7, %7 : vector<8x32xf32>
    %cst_5 = arith.constant dense<0.000000e+00> : vector<8xf32>
    %15 = vector.multi_reduction <add>, %14, %cst_5 [1] : vector<8x32xf32> to vector<8xf32>
    %16 = vector.shape_cast %15 : vector<8xf32> to vector<8x1xf32>
    %17 = arith.mulf %13, %16 : vector<8x1xf32>
    %cst_6 = arith.constant 1.000000e-16 : f32
    %18 = vector.broadcast %cst_6 : f32 to vector<8x1xf32>
    %19 = arith.maximumf %17, %18 : vector<8x1xf32>
    %20 = math.rsqrt %19 : vector<8x1xf32>
    %21 = arith.mulf %10, %20 : vector<8x1xf32>
    %cst_7 = arith.constant 0.000000e+00 : f32
    %22 = vector.broadcast %cst_7 : f32 to vector<8x1xf32>
    %23 = arith.select %5, %21, %22 : vector<8x1xi1>, vector<8x1xf32>
    %c0_8 = arith.constant 0 : index
    %c0_9 = arith.constant 0 : index
    %24 = vector.load %arg3[%c0_8, %c0_9] : memref<8x32xf32, #tpu.memory_space<vmem>>, vector<8x32xf32>
    %c0_10 = arith.constant 0 : index
    %c0_11 = arith.constant 0 : index
    %25 = vector.load %arg4[%c0_10, %c0_11] : memref<8x32xf32, #tpu.memory_space<vmem>>, vector<8x32xf32>
    %26 = arith.mulf %24, %25 : vector<8x32xf32>
    %cst_12 = arith.constant dense<0.000000e+00> : vector<8xf32>
    %27 = vector.multi_reduction <add>, %26, %cst_12 [1] : vector<8x32xf32> to vector<8xf32>
    %28 = vector.shape_cast %27 : vector<8xf32> to vector<8x1xf32>
    %29 = arith.mulf %24, %24 : vector<8x32xf32>
    %cst_13 = arith.constant dense<0.000000e+00> : vector<8xf32>
    %30 = vector.multi_reduction <add>, %29, %cst_13 [1] : vector<8x32xf32> to vector<8xf32>
    %31 = vector.shape_cast %30 : vector<8xf32> to vector<8x1xf32>
    %32 = arith.mulf %25, %25 : vector<8x32xf32>
    %cst_14 = arith.constant dense<0.000000e+00> : vector<8xf32>
    %33 = vector.multi_reduction <add>, %32, %cst_14 [1] : vector<8x32xf32> to vector<8xf32>
    %34 = vector.shape_cast %33 : vector<8xf32> to vector<8x1xf32>
    %35 = arith.mulf %31, %34 : vector<8x1xf32>
    %cst_15 = arith.constant 1.000000e-16 : f32
    %36 = vector.broadcast %cst_15 : f32 to vector<8x1xf32>
    %37 = arith.maximumf %35, %36 : vector<8x1xf32>
    %38 = math.rsqrt %37 : vector<8x1xf32>
    %39 = arith.mulf %28, %38 : vector<8x1xf32>
    %cst_16 = arith.constant 0.000000e+00 : f32
    %40 = vector.broadcast %cst_16 : f32 to vector<8x1xf32>
    %41 = arith.select %5, %39, %40 : vector<8x1xi1>, vector<8x1xf32>
    %42 = arith.addf %23, %41 : vector<8x1xf32>
    %43 = vector.shape_cast %42 : vector<8x1xf32> to vector<1x8x1xf32>
    %cst_17 = arith.constant dense<0.000000e+00> : vector<1xf32>
    %44 = vector.multi_reduction <add>, %43, %cst_17 [1, 2] : vector<1x8x1xf32> to vector<1xf32>
    %45 = vector.shape_cast %44 : vector<1xf32> to vector<1x1x1xf32>
    %46 = vector.extract %45[0, 0, 0] : f32 from vector<1x1x1xf32>
    %47 = vector.broadcast %46 : f32 to vector<1x8x128xf32>
    %c0_18 = arith.constant 0 : index
    %c0_19 = arith.constant 0 : index
    %c0_20 = arith.constant 0 : index
    %48 = vector.load %arg5[%c0_18, %c0_19, %c0_20] : memref<1x8x128xf32, #tpu.memory_space<vmem>>, vector<1x8x128xf32>
    tpu.vector_store %arg5[%c0_18, %c0_19, %c0_20], %47 {strides = array<i32>} : memref<1x8x128xf32, #tpu.memory_space<vmem>>, vector<1x8x128xf32>,
    return
  }
  func.func @transform_0(%arg0: i32) -> (i32, i32) {
    %c0_i32 = arith.constant 0 : i32
    %c0_i32_0 = arith.constant 0 : i32
    return %arg0, %c0_i32 : i32, i32
  }
  func.func @transform_1(%arg0: i32) -> (i32, i32) {
    %c0_i32 = arith.constant 0 : i32
    %c0_i32_0 = arith.constant 0 : i32
    return %arg0, %c0_i32 : i32, i32
  }
  func.func @transform_2(%arg0: i32) -> (i32, i32) {
    %c0_i32 = arith.constant 0 : i32
    %c0_i32_0 = arith.constant 0 : i32
    return %arg0, %c0_i32 : i32, i32
  }
  func.func @transform_3(%arg0: i32) -> (i32, i32) {
    %c0_i32 = arith.constant 0 : i32
    %c0_i32_0 = arith.constant 0 : i32
    return %arg0, %c0_i32 : i32, i32
  }
  func.func @transform_4(%arg0: i32) -> (i32, i32, i32) {
    %c0_i32 = arith.constant 0 : i32
    %c0_i32_0 = arith.constant 0 : i32
    %c0_i32_1 = arith.constant 0 : i32
    return %arg0, %c0_i32, %c0_i32_0 : i32, i32, i32
  }
}

</mosaic_0001>

<llo_original>
// kernel: tpu_custom_call.1
$region0: #{tpu_custom_call.1}
  #allocation0 [shape = 'u32[]', space=smem, size = 0x4, offset = 0x4, fixed_abs, tag = 'smem constant byte address 0x4 - core index']
  #allocation1 [shape = 'u32[144,128]{1,0:T(1,128)}', space=vmem, size = 0x12000, scoped, tag = 'internal scratch']
  %s0 = inlined_call_operand.hbm [shape: f32[8,32], index: 0, kind: input, shape index: {}]
  %s1 = inlined_call_operand.hbm [shape: f32[8,32], index: 1, kind: input, shape index: {}]
  %s2 = inlined_call_operand.hbm [shape: f32[8,32], index: 2, kind: input, shape index: {}]
  %s3 = inlined_call_operand.vmem [shape: f32[8,32], index: 3, kind: input, shape index: {}]
  %s4 = inlined_call_operand.hbm [shape: f32[1,8,128], index: 4, kind: output, shape index: {}]
  %s5 = sld [smem:[#allocation0]]
  $region38: #{tpu_custom_call.1} parent=0
    _
  %s7 = ssub.s32 1, %s5
  %s8 = scalar_select 0, %s7, %s5
  $region1: #{tpu_custom_call.1} parent=0
    #allocation2 [shape = 'u8[4096]{0}', space=vmem, size = 0x1000, scoped, tag = 'input window, operand 0, single buffered']
    #allocation3 [shape = 's32[1]{0}', space=sflag, size = 0x4, scoped, tag = 'scoped memory for tpu_custom_call.1']
    #allocation4 [shape = 's32[1]{0}', space=sflag, size = 0x4, scoped, tag = 'scoped memory for tpu_custom_call.1']
    #allocation5 [shape = 'u8[4096]{0}', space=vmem, size = 0x1000, scoped, tag = 'input window, operand 1, single buffered']
    #allocation6 [shape = 's32[1]{0}', space=sflag, size = 0x4, scoped, tag = 'scoped memory for tpu_custom_call.1']
    #allocation7 [shape = 'u8[4096]{0}', space=vmem, size = 0x1000, scoped, tag = 'input window, operand 2, single buffered']
    #allocation8 [shape = 'u8[4096]{0}', space=vmem, size = 0x1000, scoped, tag = 'output window, operand 0, single buffered']
    %9 = vsyncpa [#allocation3], 0
    %10 = vsyncpa [#allocation6], 0
    %11 = vsyncpa [#allocation4], 0
    // Predicated region
    $region2: #{tpu_custom_call.1} parent=1 // pred_check
      _
    $region3: #{tpu_custom_call.1} parent=1 // pred_check_branch
      %13 = sbr.rel (0) target = $region5
    $region4: #{tpu_custom_call.1} parent=1 // pred_region
      %s15 = ssub.s32 128, 128
      %16 = vsyncadd [#allocation3], %s15
      %s18 = sshll.u32 [#allocation2], 4
      %s19 = int_to_ptr.vmem [resolvable:$true] %s18
      %21 = dma.hbm_to_vmem [thread:$0]  %s0, 128, %s19, [#allocation3]
    $region5: #{tpu_custom_call.1} parent=1 // pred_fallthru
      _
    // Predicated region
    $region6: #{tpu_custom_call.1} parent=1 // pred_check
      _
    $region7: #{tpu_custom_call.1} parent=1 // pred_check_branch
      %23 = sbr.rel (0) target = $region9
    $region8: #{tpu_custom_call.1} parent=1 // pred_region
      %s25 = ssub.s32 128, 128
      %26 = vsyncadd [#allocation6], %s25
      %s28 = sshll.u32 [#allocation5], 4
      %s29 = int_to_ptr.vmem [resolvable:$true] %s28
      %31 = dma.hbm_to_vmem [thread:$0]  %s1, 128, %s29, [#allocation6]
    $region9: #{tpu_custom_call.1} parent=1 // pred_fallthru
      _
    // Predicated region
    $region10: #{tpu_custom_call.1} parent=1 // pred_check
      _
    $region11: #{tpu_custom_call.1} parent=1 // pred_check_branch
      %33 = sbr.rel (0) target = $region13
    $region12: #{tpu_custom_call.1} parent=1 // pred_region
      %s35 = ssub.s32 128, 128
      %36 = vsyncadd [#allocation6], %s35
      %s38 = sshll.u32 [#allocation7], 4
      %s39 = int_to_ptr.vmem [resolvable:$true] %s38
      %41 = dma.hbm_to_vmem [thread:$0]  %s2, 128, %s39, [#allocation6]
    $region13: #{tpu_custom_call.1} parent=1 // pred_fallthru
      _
    // Predicated region
    $region14: #{tpu_custom_call.1} parent=1 // pred_check
      _
    $region15: #{tpu_custom_call.1} parent=1 // pred_check_branch
      %43 = sbr.rel (0) target = $region17
    $region16: #{tpu_custom_call.1} parent=1 // pred_region
      _
    $region17: #{tpu_custom_call.1} parent=1 // pred_fallthru
      _
    // Predicated region
    $region18: #{tpu_custom_call.1} parent=1 // pred_check
      _
    $region19: #{tpu_custom_call.1} parent=1 // pred_check_branch
      %45 = sbr.rel (0) target = $region21
    $region20: #{tpu_custom_call.1} parent=1 // pred_region
      %46 = dma.done [#allocation3], 128
    $region21: #{tpu_custom_call.1} parent=1 // pred_fallthru
      _
    // Predicated region
    $region22: #{tpu_custom_call.1} parent=1 // pred_check
      _
    $region23: #{tpu_custom_call.1} parent=1 // pred_check_branch
      %48 = sbr.rel (0) target = $region25
    $region24: #{tpu_custom_call.1} parent=1 // pred_region
      %49 = dma.done [#allocation6], 128
    $region25: #{tpu_custom_call.1} parent=1 // pred_fallthru
      _
    // Predicated region
    $region26: #{tpu_custom_call.1} parent=1 // pred_check
      _
    $region27: #{tpu_custom_call.1} parent=1 // pred_check_branch
      %51 = sbr.rel (0) target = $region29
    $region28: #{tpu_custom_call.1} parent=1 // pred_region
      %52 = dma.done [#allocation6], 128
    $region29: #{tpu_custom_call.1} parent=1 // pred_fallthru
      _
    %s53 = smul.u32 0, 8
    %v54 = vlaneseq
    %v55 = vshrl.u32 %v54, 7
    %v56 = vstv %s53
    %v57 = vadd.s32 %v56, %v55
    %vm58 = vcmp.lt.s32.totalorder %v57, 8
    %v59 = vld [vmem:[#allocation2] sm:$0xff]
    %v60 = vld [vmem:[#allocation5] sm:$0xff]
    %v61 = vmul.f32 %v59, %v60
    %vm62 = vcmask 261120
    %v63 = vsel %vm62, %v61, 0.0
    %64 = vadd.xlane.f32.xlu0 %v63
    %v65 = vpop.xlane.xlu0 %64
    %v66 = vmul.f32 %v59, %v59
    %v67 = vsel %vm62, %v66, 0.0
    %68 = vadd.xlane.f32.xlu0 %v67
    %v69 = vpop.xlane.xlu0 %68
    %v70 = vmul.f32 %v60, %v60
    %v71 = vsel %vm62, %v70, 0.0
    %72 = vadd.xlane.f32.xlu0 %v71
    %v73 = vpop.xlane.xlu0 %72
    %v74 = vmul.f32 %v69, %v73
    %v75 = vmax.f32 %v74, 1e-16
    %v76 = vrsqrt.pop %v75
    %v77 = vmul.f32 %v65, %v76
    %v78 = vsel %vm58, %v77, 0.0
    %v79 = vld [vmem:[#allocation7] sm:$0xff]
    %v80 = vld [vmem:[%s3] sm:$0xff]
    %v81 = vmul.f32 %v79, %v80
    %v82 = vsel %vm62, %v81, 0.0
    %83 = vadd.xlane.f32.xlu0 %v82
    %v84 = vpop.xlane.xlu0 %83
    %v85 = vmul.f32 %v79, %v79
    %v86 = vsel %vm62, %v85, 0.0
    %87 = vadd.xlane.f32.xlu0 %v86
    %v88 = vpop.xlane.xlu0 %87
    %v89 = vmul.f32 %v80, %v80
    %v90 = vsel %vm62, %v89, 0.0
    %91 = vadd.xlane.f32.xlu0 %v90
    %v92 = vpop.xlane.xlu0 %91
    %v93 = vmul.f32 %v88, %v92
    %v94 = vmax.f32 %v93, 1e-16
    %v95 = vrsqrt.pop %v94
    %v96 = vmul.f32 %v84, %v95
    %v97 = vsel %vm58, %v96, 0.0
    %v98 = vadd.f32 %v78, %v97
    %vm99 = vcmask 7168
    %v100 = vsel %vm99, %v98, 0.0
    %101 = vadd.xlane.f32.xlu0 %v100
    %v102 = vpop.xlane.xlu0 %101
    %v103 = vrot.slane %v102, 4
    %v104 = vadd.f32 %v102, %v103
    %v105 = vrot.slane %v104, 2
    %v106 = vadd.f32 %v104, %v105
    %v107 = vrot.slane %v106, 1
    %v108 = vadd.f32 %v106, %v107
    %s109 = vtos %v108
    %v110 = vstv %s109
    %111 = vst [vmem:[#allocation8] sm:$0xff] %v110
    // Predicated region
    $region30: #{tpu_custom_call.1} parent=1 // pred_check
      _
    $region31: #{tpu_custom_call.1} parent=1 // pred_check_branch
      %113 = sbr.rel (0) target = $region33
    $region32: #{tpu_custom_call.1} parent=1 // pred_region
      %s115 = ssub.s32 128, 128
      %116 = vsyncadd [#allocation4], %s115
      %s118 = sshll.u32 [#allocation8], 4
      %s119 = int_to_ptr.vmem [resolvable:$true] %s118
      %121 = dma.vmem_to_hbm [thread:$0]  %s119, 128, %s4, [#allocation4]
    $region33: #{tpu_custom_call.1} parent=1 // pred_fallthru
      _
    // Predicated region
    $region34: #{tpu_custom_call.1} parent=1 // pred_check
      _
    $region35: #{tpu_custom_call.1} parent=1 // pred_check_branch
      %123 = sbr.rel (0) target = $region37
    $region36: #{tpu_custom_call.1} parent=1 // pred_region
      %124 = dma.done [#allocation4], 128
    $region37: #{tpu_custom_call.1} parent=1 // pred_fallthru
      _
    %125 = vsyncpa [#allocation3], 1
    %126 = vsyncpa [#allocation6], 1
    %127 = vsyncpa [#allocation4], 1

</llo_original>
